<compile_context>
chip_gen: v5e
topology: v5e:2x2
jax: 0.10.0
libtpu: 0.0.40
codegen_flags: <defaults>
</compile_context>

<pallas_src>
import jax
import jax.numpy as jnp
from jax.experimental import pallas as pl
from jax.experimental.pallas import tpu as pltpu


def _round_up(n, m):
    return ((n + m - 1) // m) * m


def _ids_kernel(x_ref, wa_ref, ba_ref, w1_ref, b1_ref, wo_ref, bo_ref, out_ref):
    x = x_ref[...]                                                   # (TB, D)

    # attention = softmax(Linear(x), dim=1)  (dim=1 == feature axis for 2-D x)
    logits = jnp.dot(x, wa_ref[...], preferred_element_type=jnp.float32) + ba_ref[...]
    m = jnp.max(logits, axis=-1, keepdims=True)
    e = jnp.exp(logits - m)
    inv = pl.reciprocal(jnp.sum(e, axis=-1, keepdims=True), approx=True)  # EUP
    attn = e * inv

    # x = x * attention_weights
    xa = x * attn

    # fc1 (BatchNorm1d eval already folded into w1/b1) -> ReLU
    h = jnp.dot(xa, w1_ref[...], preferred_element_type=jnp.float32) + b1_ref[...]
    h = jnp.maximum(h, 0.0)

    # dropout(p=0.7) is identity in eval mode

    # fc_out
    out = jnp.dot(h, wo_ref[...], preferred_element_type=jnp.float32) + bo_ref[...]
    out_ref[...] = out.astype(out_ref.dtype)


def fold_bn_params(params, eps=1e-5):
    """One-time host transform: fold eval-mode BatchNorm1d into fc1's w/b."""
    scale = params["gamma"] * jax.lax.rsqrt(params["var"] + eps)      # (1, H)
    w1 = params["w1"] * scale                                         # (D, H)
    b1 = (params["b1"] - params["mean"]) * scale + params["beta"]     # (1, H)
    return {
        "wa": params["wa"], "ba": params["ba"],
        "w1": w1, "b1": b1,
        "wo": params["wo"], "bo": params["bo"],
    }


def ids_net_forward(x, folded_params, *, block_b=256):
    """x: (B, input_size) float32. folded_params: output of fold_bn_params."""
    B, D = x.shape
    C = folded_params["wo"].shape[1]

    # Batch tile: multiple of 8 sublanes, <= block_b, full batch if B is tiny.
    tb = min(block_b, _round_up(B, 8))
    b_pad = _round_up(B, tb)
    if b_pad != B:
        x = jnp.pad(x, ((0, b_pad - B), (0, 0)))

    weights = (
        folded_params["wa"], folded_params["ba"],
        folded_params["w1"], folded_params["b1"],
        folded_params["wo"], folded_params["bo"],
    )

    # Weights/biases: one full-array block, constant index_map -> VMEM-resident
    # across all batch tiles.
    def const_spec(a):
        return pl.BlockSpec(a.shape, lambda i: tuple(0 for _ in a.shape))

    out = pl.pallas_call(
        _ids_kernel,
        out_shape=jax.ShapeDtypeStruct((b_pad, C), jnp.float32),
        grid=(b_pad // tb,),
        in_specs=[pl.BlockSpec((tb, D), lambda i: (i, 0))]
                 + [const_spec(w) for w in weights],
        out_specs=pl.BlockSpec((tb, C), lambda i: (i, 0)),
        compiler_params=pltpu.CompilerParams(
            dimension_semantics=("parallel",),
            # Per-step VMEM = x tile + out tile (double-buffered) + resident
            # weights; tiny at these shapes, well under the 32 MiB scoped
            # default on v7x.  Set vmem_limit_bytes here if D grows large.
        ),
    )(x, *weights)
    return out[:B]


def init_params(key, input_size, hidden=16, num_classes=4):
    """Deterministic PyTorch-style (uniform +-1/sqrt(fan_in)) initialization."""
    def linear(k, fan_in, fan_out):
        kw, kb = jax.random.split(k)
        bound = 1.0 / jnp.sqrt(fan_in)
        w = jax.random.uniform(kw, (fan_in, fan_out), jnp.float32, -bound, bound)
        b = jax.random.uniform(kb, (1, fan_out), jnp.float32, -bound, bound)
        return w, b

    k_att, k_fc1, k_out = jax.random.split(key, 3)
    wa, ba = linear(k_att, input_size, input_size)
    w1, b1 = linear(k_fc1, input_size, hidden)
    wo, bo = linear(k_out, hidden, num_classes)
    return {
        "wa": wa, "ba": ba,
        "w1": w1, "b1": b1,
        # BatchNorm1d defaults: gamma=1, beta=0, running_mean=0, running_var=1
        "gamma": jnp.ones((1, hidden), jnp.float32),
        "beta": jnp.zeros((1, hidden), jnp.float32),
        "mean": jnp.zeros((1, hidden), jnp.float32),
        "var": jnp.ones((1, hidden), jnp.float32),
        "wo": wo, "bo": bo,
    }


if __name__ == "__main__":
    key = jax.random.PRNGKey(0)
    k_x, k_p = jax.random.split(key)

    B, INPUT_SIZE, NUM_CLASSES = 8, 32, 4
    x = jax.random.normal(k_x, (B, INPUT_SIZE), jnp.float32)
    params = init_params(k_p, INPUT_SIZE, hidden=16, num_classes=NUM_CLASSES)
    folded = fold_bn_params(params)   # one-time host transform (BN -> fc1)

    out = ids_net_forward(x, folded)
    jax.block_until_ready(out)
    assert out.shape == (B, NUM_CLASSES)
    assert bool(jnp.all(jnp.isfinite(out)))
    print("KERNEL_OK")
</pallas_src>

<mosaic_0001>
module attributes {stable_mosaic.version = 11 : i64} {
  func.func @_ids_kernel(%arg0: i32, %arg1: memref<8x32xf32, #tpu.memory_space<vmem>>, %arg2: memref<32x32xf32, #tpu.memory_space<vmem>>, %arg3: memref<1x32xf32, #tpu.memory_space<vmem>>, %arg4: memref<32x16xf32, #tpu.memory_space<vmem>>, %arg5: memref<1x16xf32, #tpu.memory_space<vmem>>, %arg6: memref<16x4xf32, #tpu.memory_space<vmem>>, %arg7: memref<1x4xf32, #tpu.memory_space<vmem>>, %arg8: memref<8x4xf32, #tpu.memory_space<vmem>>) attributes {dimension_semantics = [#tpu.dimension_semantics<parallel>], iteration_bounds = array<i64: 1>, scalar_prefetch = 0 : i64, scratch_operands = 0 : i64, tpu.core_type = #tpu.core_type<tc>, window_params = [{transform_indices = @transform_0, window_bounds = array<i64: 8, 32>}, {pipeline_mode = #tpu.pipeline_mode<synchronous>, transform_indices = @transform_1, window_bounds = array<i64: 32, 32>}, {pipeline_mode = #tpu.pipeline_mode<synchronous>, transform_indices = @transform_2, window_bounds = array<i64: 1, 32>}, {pipeline_mode = #tpu.pipeline_mode<synchronous>, transform_indices = @transform_3, window_bounds = array<i64: 32, 16>}, {pipeline_mode = #tpu.pipeline_mode<synchronous>, transform_indices = @transform_4, window_bounds = array<i64: 1, 16>}, {pipeline_mode = #tpu.pipeline_mode<synchronous>, transform_indices = @transform_5, window_bounds = array<i64: 16, 4>}, {pipeline_mode = #tpu.pipeline_mode<synchronous>, transform_indices = @transform_6, window_bounds = array<i64: 1, 4>}, {transform_indices = @transform_7, window_bounds = array<i64: 8, 4>}]} {
    %c0 = arith.constant 0 : index
    %c0_0 = arith.constant 0 : index
    %0 = vector.load %arg1[%c0, %c0_0] : memref<8x32xf32, #tpu.memory_space<vmem>>, vector<8x32xf32>
    %c0_1 = arith.constant 0 : index
    %c0_2 = arith.constant 0 : index
    %1 = vector.load %arg2[%c0_1, %c0_2] : memref<32x32xf32, #tpu.memory_space<vmem>>, vector<32x32xf32>
    %cst = arith.constant dense<0.000000e+00> : vector<8x32xf32>
    %2 = tpu.matmul %0, %1, %cst {dimension_numbers = #tpu.dot_dimension_numbers<[1], [0], [0], [1], [0, 0, 1, 1], [], []>} : vector<8x32xf32>, vector<32x32xf32>, vector<8x32xf32> -> vector<8x32xf32>
    %c0_3 = arith.constant 0 : index
    %c0_4 = arith.constant 0 : index
    %3 = vector.load %arg3[%c0_3, %c0_4] : memref<1x32xf32, #tpu.memory_space<vmem>>, vector<1x32xf32>
    %4 = vector.broadcast %3 : vector<1x32xf32> to vector<8x32xf32>
    %5 = arith.addf %2, %4 : vector<8x32xf32>
    %cst_5 = arith.constant dense<0xFF800000> : vector<8xf32>
    %6 = vector.multi_reduction <maximumf>, %5, %cst_5 [1] : vector<8x32xf32> to vector<8xf32>
    %7 = vector.shape_cast %6 : vector<8xf32> to vector<8x1xf32>
    %8 = vector.broadcast %7 : vector<8x1xf32> to vector<8x32xf32>
    %9 = arith.subf %5, %8 : vector<8x32xf32>
    %10 = math.exp %9 : vector<8x32xf32>
    %cst_6 = arith.constant dense<0.000000e+00> : vector<8xf32>
    %11 = vector.multi_reduction <add>, %10, %cst_6 [1] : vector<8x32xf32> to vector<8xf32>
    %12 = vector.shape_cast %11 : vector<8xf32> to vector<8x1xf32>
    %13 = tpu.reciprocal %12 {approx = true} : vector<8x1xf32> -> vector<8x1xf32>
    %14 = vector.broadcast %13 : vector<8x1xf32> to vector<8x32xf32>
    %15 = arith.mulf %10, %14 : vector<8x32xf32>
    %16 = arith.mulf %0, %15 : vector<8x32xf32>
    %c0_7 = arith.constant 0 : index
    %c0_8 = arith.constant 0 : index
    %17 = vector.load %arg4[%c0_7, %c0_8] : memref<32x16xf32, #tpu.memory_space<vmem>>, vector<32x16xf32>
    %cst_9 = arith.constant dense<0.000000e+00> : vector<8x16xf32>
    %18 = tpu.matmul %16, %17, %cst_9 {dimension_numbers = #tpu.dot_dimension_numbers<[1], [0], [0], [1], [0, 0, 1, 1], [], []>} : vector<8x32xf32>, vector<32x16xf32>, vector<8x16xf32> -> vector<8x16xf32>
    %c0_10 = arith.constant 0 : index
    %c0_11 = arith.constant 0 : index
    %19 = vector.load %arg5[%c0_10, %c0_11] : memref<1x16xf32, #tpu.memory_space<vmem>>, vector<1x16xf32>
    %20 = vector.broadcast %19 : vector<1x16xf32> to vector<8x16xf32>
    %21 = arith.addf %18, %20 : vector<8x16xf32>
    %cst_12 = arith.constant 0.000000e+00 : f32
    %22 = vector.broadcast %cst_12 : f32 to vector<8x16xf32>
    %23 = arith.maximumf %21, %22 : vector<8x16xf32>
    %c0_13 = arith.constant 0 : index
    %c0_14 = arith.constant 0 : index
    %24 = vector.load %arg6[%c0_13, %c0_14] : memref<16x4xf32, #tpu.memory_space<vmem>>, vector<16x4xf32>
    %cst_15 = arith.constant dense<0.000000e+00> : vector<8x4xf32>
    %25 = tpu.matmul %23, %24, %cst_15 {dimension_numbers = #tpu.dot_dimension_numbers<[1], [0], [0], [1], [0, 0, 1, 1], [], []>} : vector<8x16xf32>, vector<16x4xf32>, vector<8x4xf32> -> vector<8x4xf32>
    %c0_16 = arith.constant 0 : index
    %c0_17 = arith.constant 0 : index
    %26 = vector.load %arg7[%c0_16, %c0_17] : memref<1x4xf32, #tpu.memory_space<vmem>>, vector<1x4xf32>
    %27 = vector.broadcast %26 : vector<1x4xf32> to vector<8x4xf32>
    %28 = arith.addf %25, %27 : vector<8x4xf32>
    %c0_18 = arith.constant 0 : index
    %c0_19 = arith.constant 0 : index
    %29 = vector.load %arg8[%c0_18, %c0_19] : memref<8x4xf32, #tpu.memory_space<vmem>>, vector<8x4xf32>
    tpu.vector_store %arg8[%c0_18, %c0_19], %28 {strides = array<i32>} : memref<8x4xf32, #tpu.memory_space<vmem>>, vector<8x4xf32>,
    return
  }
  func.func @transform_0(%arg0: i32) -> (i32, i32) {
    %c0_i32 = arith.constant 0 : i32
    %c0_i32_0 = arith.constant 0 : i32
    return %arg0, %c0_i32 : i32, i32
  }
  func.func @transform_1(%arg0: i32) -> (i32, i32) {
    %c0_i32 = arith.constant 0 : i32
    %c0_i32_0 = arith.constant 0 : i32
    %c0_i32_1 = arith.constant 0 : i32
    return %c0_i32, %c0_i32_0 : i32, i32
  }
  func.func @transform_2(%arg0: i32) -> (i32, i32) {
    %c0_i32 = arith.constant 0 : i32
    %c0_i32_0 = arith.constant 0 : i32
    %c0_i32_1 = arith.constant 0 : i32
    return %c0_i32, %c0_i32_0 : i32, i32
  }
  func.func @transform_3(%arg0: i32) -> (i32, i32) {
    %c0_i32 = arith.constant 0 : i32
    %c0_i32_0 = arith.constant 0 : i32
    %c0_i32_1 = arith.constant 0 : i32
    return %c0_i32, %c0_i32_0 : i32, i32
  }
  func.func @transform_4(%arg0: i32) -> (i32, i32) {
    %c0_i32 = arith.constant 0 : i32
    %c0_i32_0 = arith.constant 0 : i32
    %c0_i32_1 = arith.constant 0 : i32
    return %c0_i32, %c0_i32_0 : i32, i32
  }
  func.func @transform_5(%arg0: i32) -> (i32, i32) {
    %c0_i32 = arith.constant 0 : i32
    %c0_i32_0 = arith.constant 0 : i32
    %c0_i32_1 = arith.constant 0 : i32
    return %c0_i32, %c0_i32_0 : i32, i32
  }
  func.func @transform_6(%arg0: i32) -> (i32, i32) {
    %c0_i32 = arith.constant 0 : i32
    %c0_i32_0 = arith.constant 0 : i32
    %c0_i32_1 = arith.constant 0 : i32
    return %c0_i32, %c0_i32_0 : i32, i32
  }
  func.func @transform_7(%arg0: i32) -> (i32, i32) {
    %c0_i32 = arith.constant 0 : i32
    %c0_i32_0 = arith.constant 0 : i32
    return %arg0, %c0_i32 : i32, i32
  }
}

</mosaic_0001>

<llo_original>
// kernel: tpu_custom_call.1
$region0: #{tpu_custom_call.1}
  #allocation0 [shape = 'u32[]', space=smem, size = 0x4, offset = 0x4, fixed_abs, tag = 'smem constant byte address 0x4 - core index']
  #allocation1 [shape = 'u32[72,128]{1,0:T(1,128)}', space=vmem, size = 0x9000, scoped, tag = 'internal scratch']
  %s0 = inlined_call_operand.vmem [shape: f32[8,32], index: 0, kind: input, shape index: {}]
  %s1 = inlined_call_operand.vmem [shape: f32[32,32], index: 1, kind: input, shape index: {}]
  %s2 = inlined_call_operand.vmem [shape: f32[1,32], index: 2, kind: input, shape index: {}]
  %s3 = inlined_call_operand.vmem [shape: f32[32,16], index: 3, kind: input, shape index: {}]
  %s4 = inlined_call_operand.vmem [shape: f32[1,16], index: 4, kind: input, shape index: {}]
  %s5 = inlined_call_operand.vmem [shape: f32[16,4], index: 5, kind: input, shape index: {}]
  %s6 = inlined_call_operand.vmem [shape: f32[1,4], index: 6, kind: input, shape index: {}]
  %s7 = inlined_call_operand.vmem [shape: f32[8,4], index: 7, kind: output, shape index: {}]
  %s8 = sld [smem:[#allocation0]]
  $region38: #{tpu_custom_call.1} parent=0
    _
  %s10 = ssub.s32 1, %s8
  %s11 = scalar_select 0, %s10, %s8
  // Predicated region
  $region2: #{tpu_custom_call.1} parent=0 // pred_check
    _
  $region3: #{tpu_custom_call.1} parent=0 // pred_check_branch
    %13 = sbr.rel (0) target = $region5
  $region4: #{tpu_custom_call.1} parent=0 // pred_region
    _
  $region5: #{tpu_custom_call.1} parent=0 // pred_fallthru
    _
  // Predicated region
  $region6: #{tpu_custom_call.1} parent=0 // pred_check
    _
  $region7: #{tpu_custom_call.1} parent=0 // pred_check_branch
    %15 = sbr.rel (0) target = $region9
  $region8: #{tpu_custom_call.1} parent=0 // pred_region
    _
  $region9: #{tpu_custom_call.1} parent=0 // pred_fallthru
    _
  // Predicated region
  $region10: #{tpu_custom_call.1} parent=0 // pred_check
    _
  $region11: #{tpu_custom_call.1} parent=0 // pred_check_branch
    %17 = sbr.rel (0) target = $region13
  $region12: #{tpu_custom_call.1} parent=0 // pred_region
    _
  $region13: #{tpu_custom_call.1} parent=0 // pred_fallthru
    _
  // Predicated region
  $region14: #{tpu_custom_call.1} parent=0 // pred_check
    _
  $region15: #{tpu_custom_call.1} parent=0 // pred_check_branch
    %19 = sbr.rel (0) target = $region17
  $region16: #{tpu_custom_call.1} parent=0 // pred_region
    _
  $region17: #{tpu_custom_call.1} parent=0 // pred_fallthru
    _
  // Predicated region
  $region18: #{tpu_custom_call.1} parent=0 // pred_check
    _
  $region19: #{tpu_custom_call.1} parent=0 // pred_check_branch
    %21 = sbr.rel (0) target = $region21
  $region20: #{tpu_custom_call.1} parent=0 // pred_region
    _
  $region21: #{tpu_custom_call.1} parent=0 // pred_fallthru
    _
  // Predicated region
  $region22: #{tpu_custom_call.1} parent=0 // pred_check
    _
  $region23: #{tpu_custom_call.1} parent=0 // pred_check_branch
    %23 = sbr.rel (0) target = $region25
  $region24: #{tpu_custom_call.1} parent=0 // pred_region
    _
  $region25: #{tpu_custom_call.1} parent=0 // pred_fallthru
    _
  // Predicated region
  $region26: #{tpu_custom_call.1} parent=0 // pred_check
    _
  $region27: #{tpu_custom_call.1} parent=0 // pred_check_branch
    %25 = sbr.rel (0) target = $region29
  $region28: #{tpu_custom_call.1} parent=0 // pred_region
    _
  $region29: #{tpu_custom_call.1} parent=0 // pred_fallthru
    _
  %v26 = vld [vmem:[%s0] sm:$0xff]
  %v27 = vld [vmem:[%s1] sm:$0xff]
  %v28 = vld [vmem:[%s1 + $0x8] sm:$0xff]
  %v29 = vld [vmem:[%s1 + $0x10] sm:$0xff]
  %v30 = vld [vmem:[%s1 + $0x18] sm:$0xff]
  %v31 = vld [vmem:[%s2] sm:$0x1]
  %v33 = vperm.slane %v31, 0
  %vm35 = vcmask 261120
  %v37 = vsel %vm35, %v26, 0
  %39 = vmatpush.msra.mxu0 0.0
  %40 = vmatpush.msra.mxu0 0.0
  %41 = vmatpush.msra.mxu0 0.0
  %42 = vmatpush.msra.mxu0 0.0
  %43 = vmatpush.msra.mxu0 0.0
  %44 = vmatpush.msra.mxu0 0.0
  %45 = vmatpush.msra.mxu0 0.0
  %46 = vmatpush.msra.mxu0 0.0
  %47 = vmatpush.msra.mxu0 0.0
  %48 = vmatpush.msra.mxu0 0.0
  %49 = vmatpush.msra.mxu0 0.0
  %50 = vmatpush.msra.mxu0 0.0
  %51 = vmatpush.msra.mxu0 %v30
  %52 = vmatpush.msra.mxu0 %v29
  %53 = vmatpush.msra.mxu0 %v28
  %54 = vmatpush.msra.mxu0 %v27
  %55 = vmatmul.f32.gmra.mxu0 %v37
  %v56 = vpop.f32.mrf.mxu0
  %v57 = vadd.f32 %v33, %v56
  %58 = vdwg.mxu0
  %v59 = vsel %vm35, %v57, -inf
  %60 = vmax.xlane.f32.xlu0 %v59
  %v61 = vpop.xlane.xlu0 %60
  %v62 = vsub.f32 %v57, %v61
  %v63 = vmul.f32 %v62, 1.442695
  %v64 = vpow.pop %v63
  %v65 = vsel %vm35, %v64, 0.0
  %66 = vadd.xlane.f32.xlu0 %v65
  %v67 = vpop.xlane.xlu0 %66
  %v68 = vrcp.pop %v67
  %v69 = vmul.f32 %v64, %v68
  %v70 = vmul.f32 %v26, %v69
  %v71 = vld [vmem:[%s3] sm:$0xff]
  %v72 = vld [vmem:[%s3 + $0x8] sm:$0xff]
  %v73 = vld [vmem:[%s3 + $0x10] sm:$0xff]
  %v74 = vld [vmem:[%s3 + $0x18] sm:$0xff]
  %v75 = vld [vmem:[%s4] sm:$0x1]
  %v77 = vperm.slane %v75, 0
  %v80 = vsel %vm35, %v70, 0
  %82 = vmatpush.msra.mxu0 0.0
  %83 = vmatpush.msra.mxu0 0.0
  %84 = vmatpush.msra.mxu0 0.0
  %85 = vmatpush.msra.mxu0 0.0
  %86 = vmatpush.msra.mxu0 0.0
  %87 = vmatpush.msra.mxu0 0.0
  %88 = vmatpush.msra.mxu0 0.0
  %89 = vmatpush.msra.mxu0 0.0
  %90 = vmatpush.msra.mxu0 0.0
  %91 = vmatpush.msra.mxu0 0.0
  %92 = vmatpush.msra.mxu0 0.0
  %93 = vmatpush.msra.mxu0 0.0
  %94 = vmatpush.msra.mxu0 %v74
  %95 = vmatpush.msra.mxu0 %v73
  %96 = vmatpush.msra.mxu0 %v72
  %97 = vmatpush.msra.mxu0 %v71
  %98 = vmatmul.f32.gmra.mxu0 %v80
  %v99 = vpop.f32.mrf.mxu0
  %v100 = vadd.f32 %v77, %v99
  %101 = vdwg.mxu0
  %v102 = vmax.f32 %v100, 0.0
  %v103 = vld [vmem:[%s5] sm:$0xff]
  %v104 = vld [vmem:[%s5 + $0x8] sm:$0xff]
  %v105 = vld [vmem:[%s6] sm:$0x1]
  %v107 = vperm.slane %v105, 0
  %vm109 = vcmask 130048
  %v111 = vsel %vm109, %v102, 0
  %113 = vmatpush.msra.mxu0 0.0
  %114 = vmatpush.msra.mxu0 0.0
  %115 = vmatpush.msra.mxu0 0.0
  %116 = vmatpush.msra.mxu0 0.0
  %117 = vmatpush.msra.mxu0 0.0
  %118 = vmatpush.msra.mxu0 0.0
  %119 = vmatpush.msra.mxu0 0.0
  %120 = vmatpush.msra.mxu0 0.0
  %121 = vmatpush.msra.mxu0 0.0
  %122 = vmatpush.msra.mxu0 0.0
  %123 = vmatpush.msra.mxu0 0.0
  %124 = vmatpush.msra.mxu0 0.0
  %125 = vmatpush.msra.mxu0 0.0
  %126 = vmatpush.msra.mxu0 0.0
  %127 = vmatpush.msra.mxu0 %v104
  %128 = vmatpush.msra.mxu0 %v103
  %129 = vmatmul.f32.gmra.mxu0 %v111
  %v130 = vpop.f32.mrf.mxu0
  %v131 = vadd.f32 %v107, %v130
  %132 = vdwg.mxu0
  %vm133 = vcmask 31744
  %134 = vst.msk [vmem:[%s7] sm:$0xff] %vm133, %v131
  // Predicated region
  $region30: #{tpu_custom_call.1} parent=0 // pred_check
    _
  $region31: #{tpu_custom_call.1} parent=0 // pred_check_branch
    %136 = sbr.rel (0) target = $region33
  $region32: #{tpu_custom_call.1} parent=0 // pred_region
    _
  $region33: #{tpu_custom_call.1} parent=0 // pred_fallthru
    _
  // Predicated region
  $region34: #{tpu_custom_call.1} parent=0 // pred_check
    _
  $region35: #{tpu_custom_call.1} parent=0 // pred_check_branch
    %138 = sbr.rel (0) target = $region37
  $region36: #{tpu_custom_call.1} parent=0 // pred_region
    _
  $region37: #{tpu_custom_call.1} parent=0 // pred_fallthru
    _

</llo_original>
